<compile_context>
chip_gen: v5e
topology: v5e:2x2
jax: 0.10.0
libtpu: 0.0.40
codegen_flags: <defaults>
</compile_context>

<pallas_src>
import math

import jax
import jax.numpy as jnp
from jax import lax
from jax.experimental import pallas as pl
from jax.experimental.pallas import tpu as pltpu


def _round_up(x, m):
    return (x + m - 1) // m * m


def _linear_kernel_single(x_ref, w_ref, b_ref, o_ref):
    # Whole K fits in one tile: no accumulator needed.
    acc = lax.dot_general(
        x_ref[...], w_ref[...],
        dimension_numbers=(((1,), (1,)), ((), ())),   # contract K (last of both)
        preferred_element_type=jnp.float32)
    o_ref[...] = (acc + b_ref[...]).astype(o_ref.dtype)


def _linear_kernel_accum(x_ref, w_ref, b_ref, o_ref, acc_ref):
    # grid = (i over M tiles, j over N tiles, k over K tiles); K is the
    # reduction axis and is last ("arbitrary"), so acc_ref stays resident.
    k = pl.program_id(2)

    @pl.when(k == 0)
    def _():
        acc_ref[...] = jnp.zeros_like(acc_ref)

    # x tile: (tm, tk); w tile (PyTorch layout): (tn, tk) -> (tm, tn) in f32.
    acc_ref[...] += lax.dot_general(
        x_ref[...], w_ref[...],
        dimension_numbers=(((1,), (1,)), ((), ())),
        preferred_element_type=jnp.float32)

    @pl.when(k == pl.num_programs(2) - 1)
    def _():
        # Bias added exactly once, on the final K step.
        o_ref[...] = (acc_ref[...] + b_ref[...]).astype(o_ref.dtype)


def linear_norm(x, weight, bias=None):
    """x: [..., in_dim]; weight: [out_dim, in_dim] (PyTorch layout); bias: [out_dim] or None."""
    in_dim = x.shape[-1]
    out_dim = weight.shape[0]
    lead = x.shape[:-1]
    m = math.prod(lead) if lead else 1

    x2 = x.reshape(m, in_dim)

    # --- Tile sizes -------------------------------------------------------
    # N, K: pad only to the 128-lane boundary and pick the largest tile
    # (<= 256 for N, <= 512 for K) that divides the padded extent exactly,
    # so no padding beyond the mandatory lane alignment is added.
    n_pad = _round_up(out_dim, 128)
    tn = 256 if n_pad % 256 == 0 else 128
    k_pad = _round_up(in_dim, 128)
    tk = 512 if k_pad % 512 == 0 else (256 if k_pad % 256 == 0 else 128)
    # M: pad to the sublane (8) boundary; cap tile at 256 rows.
    tm = min(256, _round_up(m, 8))
    m_pad = _round_up(m, tm)

    # Zero-pad to tile multiples (no-op when already aligned). Zeros along K
    # contribute nothing to the accumulation; padded N/M rows are sliced off.
    if (m_pad, k_pad) != (m, in_dim):
        x2 = jnp.pad(x2, ((0, m_pad - m), (0, k_pad - in_dim)))
    w = weight
    if (n_pad, k_pad) != (out_dim, in_dim):
        w = jnp.pad(w, ((0, n_pad - out_dim), (0, k_pad - in_dim)))
    if bias is None:
        b2 = jnp.zeros((1, n_pad), jnp.float32)
    else:
        b2 = bias.astype(jnp.float32).reshape(1, out_dim)
        if n_pad != out_dim:
            b2 = jnp.pad(b2, ((0, 0), (0, n_pad - out_dim)))

    grid_k = k_pad // tk

    # TODO(synk): for v6e/v7x deployments where accuracy allows, feed bf16 x/w
    # (keep f32 accumulation) to double effective MXU throughput and halve
    # weight HBM traffic.
    itemsize = jnp.dtype(x.dtype).itemsize
    cost = pl.CostEstimate(
        flops=2 * m_pad * n_pad * k_pad,
        transcendentals=0,
        bytes_accessed=itemsize * (m_pad * k_pad + n_pad * k_pad + m_pad * n_pad),
    )

    if grid_k == 1:
        grid = (m_pad // tm, n_pad // tn)
        grid_spec = pltpu.PrefetchScalarGridSpec(
            num_scalar_prefetch=0,
            grid=grid,
            in_specs=[
                pl.BlockSpec((tm, tk), lambda i, j: (i, 0)),   # x tile
                pl.BlockSpec((tn, tk), lambda i, j: (j, 0)),   # weight tile
                pl.BlockSpec((1, tn), lambda i, j: (0, j)),    # bias tile
            ],
            out_specs=pl.BlockSpec((tm, tn), lambda i, j: (i, j)),
            scratch_shapes=[],
        )
        kernel = _linear_kernel_single
        dim_sem = ("parallel", "parallel")
    else:
        grid = (m_pad // tm, n_pad // tn, grid_k)
        grid_spec = pltpu.PrefetchScalarGridSpec(
            num_scalar_prefetch=0,
            grid=grid,
            in_specs=[
                pl.BlockSpec((tm, tk), lambda i, j, k: (i, k)),   # x tile
                pl.BlockSpec((tn, tk), lambda i, j, k: (j, k)),   # weight tile
                pl.BlockSpec((1, tn), lambda i, j, k: (0, j)),    # bias tile
            ],
            out_specs=pl.BlockSpec((tm, tn), lambda i, j, k: (i, j)),
            scratch_shapes=[pltpu.VMEM((tm, tn), jnp.float32)],
        )
        kernel = _linear_kernel_accum
        dim_sem = ("parallel", "parallel", "arbitrary")

    out = pl.pallas_call(
        kernel,
        out_shape=jax.ShapeDtypeStruct((m_pad, n_pad), x.dtype),
        grid_spec=grid_spec,
        compiler_params=pltpu.CompilerParams(dimension_semantics=dim_sem),
        cost_estimate=cost,
    )(x2, w, b2)

    out = out[:m, :out_dim]
    return out.reshape(*lead, out_dim)


def init_linear_norm_params(key, in_dim, out_dim, w_init_gain="linear"):
    """xavier_uniform weight (PyTorch semantics) + default nn.Linear bias init."""
    kw, kb = jax.random.split(key)
    gain = 1.0  # torch.nn.init.calculate_gain('linear') == 1.0
    limit = gain * math.sqrt(6.0 / (in_dim + out_dim))
    weight = jax.random.uniform(
        kw, (out_dim, in_dim), minval=-limit, maxval=limit, dtype=jnp.float32)
    b_bound = 1.0 / math.sqrt(in_dim)
    bias = jax.random.uniform(
        kb, (out_dim,), minval=-b_bound, maxval=b_bound, dtype=jnp.float32)
    return weight, bias


if __name__ == "__main__":
    key = jax.random.PRNGKey(0)
    k_x, k_p, k_x2, k_p2 = jax.random.split(key, 4)

    # Small demo shapes consistent with the module: (batch, seq, in_dim) -> out_dim.
    batch, seq, in_dim, out_dim = 2, 8, 32, 32
    x = jax.random.normal(k_x, (batch, seq, in_dim), dtype=jnp.float32)
    weight, bias = init_linear_norm_params(k_p, in_dim, out_dim)

    y = linear_norm(x, weight, bias)
    jax.block_until_ready(y)
    y_ref = x @ weight.T + bias
    assert y.shape == (batch, seq, out_dim)
    assert jnp.allclose(y, y_ref, atol=1e-5, rtol=1e-5)

    # Second check exercising the K-tiled accumulator path (in_dim > 512).
    in2, out2 = 1024, 256
    x_big = jax.random.normal(k_x2, (batch, seq, in2), dtype=jnp.float32)
    w_big, b_big = init_linear_norm_params(k_p2, in2, out2)
    y_big = linear_norm(x_big, w_big, b_big)
    jax.block_until_ready(y_big)
    y_big_ref = x_big @ w_big.T + b_big
    # Looser tolerance: both sides use the MXU's default f32 matmul precision,
    # but with different accumulation tiling over K=1024.
    assert jnp.allclose(y_big, y_big_ref, atol=1e-2, rtol=1e-2)

    print("KERNEL_OK")
</pallas_src>

<mosaic_0001>
module attributes {stable_mosaic.version = 11 : i64} {
  func.func @_linear_kernel_single(%arg0: i32, %arg1: i32, %arg2: memref<16x128xf32, #tpu.memory_space<vmem>>, %arg3: memref<128x128xf32, #tpu.memory_space<vmem>>, %arg4: memref<1x128xf32, #tpu.memory_space<vmem>>, %arg5: memref<16x128xf32, #tpu.memory_space<vmem>>) attributes {dimension_semantics = [#tpu.dimension_semantics<parallel>, #tpu.dimension_semantics<parallel>], iteration_bounds = array<i64: 1, 1>, scalar_prefetch = 0 : i64, scratch_operands = 0 : i64, tpu.core_type = #tpu.core_type<tc>, window_params = [{transform_indices = @transform_0, window_bounds = array<i64: 16, 128>}, {transform_indices = @transform_1, window_bounds = array<i64: 128, 128>}, {transform_indices = @transform_2, window_bounds = array<i64: 1, 128>}, {transform_indices = @transform_3, window_bounds = array<i64: 16, 128>}]} {
    %c0 = arith.constant 0 : index
    %c0_0 = arith.constant 0 : index
    %0 = vector.load %arg2[%c0, %c0_0] : memref<16x128xf32, #tpu.memory_space<vmem>>, vector<16x128xf32>
    %c0_1 = arith.constant 0 : index
    %c0_2 = arith.constant 0 : index
    %1 = vector.load %arg3[%c0_1, %c0_2] : memref<128x128xf32, #tpu.memory_space<vmem>>, vector<128x128xf32>
    %cst = arith.constant dense<0.000000e+00> : vector<16x128xf32>
    %2 = tpu.matmul %0, %1, %cst {dimension_numbers = #tpu.dot_dimension_numbers<[1], [1], [0], [0], [0, 0, 1, 0], [], []>} : vector<16x128xf32>, vector<128x128xf32>, vector<16x128xf32> -> vector<16x128xf32>
    %c0_3 = arith.constant 0 : index
    %c0_4 = arith.constant 0 : index
    %3 = vector.load %arg4[%c0_3, %c0_4] : memref<1x128xf32, #tpu.memory_space<vmem>>, vector<1x128xf32>
    %4 = vector.broadcast %3 : vector<1x128xf32> to vector<16x128xf32>
    %5 = arith.addf %2, %4 : vector<16x128xf32>
    %c0_5 = arith.constant 0 : index
    %c0_6 = arith.constant 0 : index
    %6 = vector.load %arg5[%c0_5, %c0_6] : memref<16x128xf32, #tpu.memory_space<vmem>>, vector<16x128xf32>
    tpu.vector_store %arg5[%c0_5, %c0_6], %5 {strides = array<i32>} : memref<16x128xf32, #tpu.memory_space<vmem>>, vector<16x128xf32>,
    return
  }
  func.func @transform_0(%arg0: i32, %arg1: i32) -> (i32, i32) {
    %c0_i32 = arith.constant 0 : i32
    %c0_i32_0 = arith.constant 0 : i32
    return %arg0, %c0_i32 : i32, i32
  }
  func.func @transform_1(%arg0: i32, %arg1: i32) -> (i32, i32) {
    %c0_i32 = arith.constant 0 : i32
    %c0_i32_0 = arith.constant 0 : i32
    return %arg1, %c0_i32 : i32, i32
  }
  func.func @transform_2(%arg0: i32, %arg1: i32) -> (i32, i32) {
    %c0_i32 = arith.constant 0 : i32
    %c0_i32_0 = arith.constant 0 : i32
    return %c0_i32, %arg1 : i32, i32
  }
  func.func @transform_3(%arg0: i32, %arg1: i32) -> (i32, i32) {
    %c0_i32 = arith.constant 0 : i32
    return %arg0, %arg1 : i32, i32
  }
}

</mosaic_0001>

<llo_original>
// kernel: tpu_custom_call.1
$region0: #{tpu_custom_call.1}
  #allocation0 [shape = 'u32[]', space=smem, size = 0x4, offset = 0x4, fixed_abs, tag = 'smem constant byte address 0x4 - core index']
  #allocation1 [shape = 'u32[72,128]{1,0:T(1,128)}', space=vmem, size = 0x9000, scoped, tag = 'internal scratch']
  %s0 = inlined_call_operand.hbm [shape: f32[16,128], index: 0, kind: input, shape index: {}]
  %s1 = inlined_call_operand.hbm [shape: f32[128,128], index: 1, kind: input, shape index: {}]
  %s2 = inlined_call_operand.vmem [shape: f32[1,128], index: 2, kind: input, shape index: {}]
  %s3 = inlined_call_operand.hbm [shape: f32[16,128], index: 3, kind: output, shape index: {}]
  %s4 = sld [smem:[#allocation0]]
  $region30: #{tpu_custom_call.1} parent=0
    _
  %s6 = ssub.s32 1, %s4
  %s7 = scalar_select 0, %s6, %s4
  $region1: #{tpu_custom_call.1} parent=0
    #allocation2 [shape = 'u8[8192]{0}', space=vmem, size = 0x2000, scoped, tag = 'input window, operand 0, single buffered']
    #allocation3 [shape = 's32[1]{0}', space=sflag, size = 0x4, scoped, tag = 'scoped memory for tpu_custom_call.1']
    #allocation4 [shape = 's32[1]{0}', space=sflag, size = 0x4, scoped, tag = 'scoped memory for tpu_custom_call.1']
    #allocation5 [shape = 'u8[65536]{0}', space=vmem, size = 0x10000, scoped, tag = 'input window, operand 1, single buffered']
    #allocation6 [shape = 's32[1]{0}', space=sflag, size = 0x4, scoped, tag = 'scoped memory for tpu_custom_call.1']
    #allocation7 [shape = 'u8[8192]{0}', space=vmem, size = 0x2000, scoped, tag = 'output window, operand 0, single buffered']
    %8 = vsyncpa [#allocation3], 0
    %9 = vsyncpa [#allocation6], 0
    %10 = vsyncpa [#allocation4], 0
    // Predicated region
    $region2: #{tpu_custom_call.1} parent=1 // pred_check
      _
    $region3: #{tpu_custom_call.1} parent=1 // pred_check_branch
      %12 = sbr.rel (0) target = $region5
    $region4: #{tpu_custom_call.1} parent=1 // pred_region
      %14 = vsyncadd [#allocation3], 0
      %s15 = sshll.u32 %s0, 4
      %s16 = int_to_ptr.hbm [resolvable:$true] %s15
      %s17 = sshll.u32 [#allocation2], 4
      %s18 = int_to_ptr.vmem [resolvable:$true] %s17
      %23 = dma.hbm_to_vmem [thread:$0]  %s16, 256, %s18, [#allocation3], 128, 128, 8
    $region5: #{tpu_custom_call.1} parent=1 // pred_fallthru
      _
    // Predicated region
    $region6: #{tpu_custom_call.1} parent=1 // pred_check
      _
    $region7: #{tpu_custom_call.1} parent=1 // pred_check_branch
      %25 = sbr.rel (0) target = $region9
    $region8: #{tpu_custom_call.1} parent=1 // pred_region
      %27 = vsyncadd [#allocation6], 0
      %s28 = sshll.u32 %s1, 4
      %s29 = int_to_ptr.hbm [resolvable:$true] %s28
      %s30 = sshll.u32 [#allocation5], 4
      %s31 = int_to_ptr.vmem [resolvable:$true] %s30
      %36 = dma.hbm_to_vmem [thread:$0]  %s29, 2048, %s31, [#allocation6], 128, 128, 8
    $region9: #{tpu_custom_call.1} parent=1 // pred_fallthru
      _
    // Predicated region
    $region10: #{tpu_custom_call.1} parent=1 // pred_check
      _
    $region11: #{tpu_custom_call.1} parent=1 // pred_check_branch
      %38 = sbr.rel (0) target = $region13
    $region12: #{tpu_custom_call.1} parent=1 // pred_region
      _
    $region13: #{tpu_custom_call.1} parent=1 // pred_fallthru
      _
    // Predicated region
    $region14: #{tpu_custom_call.1} parent=1 // pred_check
      _
    $region15: #{tpu_custom_call.1} parent=1 // pred_check_branch
      %40 = sbr.rel (0) target = $region17
    $region16: #{tpu_custom_call.1} parent=1 // pred_region
      %42 = dma.done [#allocation3], 256
    $region17: #{tpu_custom_call.1} parent=1 // pred_fallthru
      _
    // Predicated region
    $region18: #{tpu_custom_call.1} parent=1 // pred_check
      _
    $region19: #{tpu_custom_call.1} parent=1 // pred_check_branch
      %44 = sbr.rel (0) target = $region21
    $region20: #{tpu_custom_call.1} parent=1 // pred_region
      %46 = dma.done [#allocation6], 2048
    $region21: #{tpu_custom_call.1} parent=1 // pred_fallthru
      _
    %v47 = vld [vmem:[#allocation2] sm:$0xff]
    %v48 = vld [vmem:[#allocation2 + $0x8] sm:$0xff]
    %v49 = vld [vmem:[#allocation5] sm:$0xff]
    %v50 = vld [vmem:[#allocation5 + $0x8] sm:$0xff]
    %v51 = vld [vmem:[#allocation5 + $0x10] sm:$0xff]
    %v52 = vld [vmem:[#allocation5 + $0x18] sm:$0xff]
    %v53 = vld [vmem:[#allocation5 + $0x20] sm:$0xff]
    %v54 = vld [vmem:[#allocation5 + $0x28] sm:$0xff]
    %v55 = vld [vmem:[#allocation5 + $0x30] sm:$0xff]
    %v56 = vld [vmem:[#allocation5 + $0x38] sm:$0xff]
    %v57 = vld [vmem:[#allocation5 + $0x40] sm:$0xff]
    %v58 = vld [vmem:[#allocation5 + $0x48] sm:$0xff]
    %v59 = vld [vmem:[#allocation5 + $0x50] sm:$0xff]
    %v60 = vld [vmem:[#allocation5 + $0x58] sm:$0xff]
    %v61 = vld [vmem:[#allocation5 + $0x60] sm:$0xff]
    %v62 = vld [vmem:[#allocation5 + $0x68] sm:$0xff]
    %v63 = vld [vmem:[#allocation5 + $0x70] sm:$0xff]
    %v64 = vld [vmem:[#allocation5 + $0x78] sm:$0xff]
    %v65 = vld [vmem:[%s2] sm:$0x1]
    %v67 = vperm.slane %v65, 0
    %69 = vmatpush.xpose.msra.mxu0 %v64
    %70 = vmatpush.xpose.msra.mxu0 %v63
    %71 = vmatpush.xpose.msra.mxu0 %v62
    %72 = vmatpush.xpose.msra.mxu0 %v61
    %73 = vmatpush.xpose.msra.mxu0 %v60
    %74 = vmatpush.xpose.msra.mxu0 %v59
    %75 = vmatpush.xpose.msra.mxu0 %v58
    %76 = vmatpush.xpose.msra.mxu0 %v57
    %77 = vmatpush.xpose.msra.mxu0 %v56
    %78 = vmatpush.xpose.msra.mxu0 %v55
    %79 = vmatpush.xpose.msra.mxu0 %v54
    %80 = vmatpush.xpose.msra.mxu0 %v53
    %81 = vmatpush.xpose.msra.mxu0 %v52
    %82 = vmatpush.xpose.msra.mxu0 %v51
    %83 = vmatpush.xpose.msra.mxu0 %v50
    %84 = vmatpush.xpose.msra.mxu0 %v49
    %85 = vmatmul.f32.gmra.mxu0 %v47
    %v86 = vpop.f32.mrf.mxu0
    %v87 = vadd.f32 %v67, %v86
    %88 = vmatmul.f32.gmra.mxu0 %v48
    %v89 = vpop.f32.mrf.mxu0
    %v90 = vadd.f32 %v67, %v89
    %91 = vdwg.mxu0
    %92 = vst [vmem:[#allocation7] sm:$0xff] %v87
    %93 = vst [vmem:[#allocation7 + $0x8] sm:$0xff] %v90
    // Predicated region
    $region22: #{tpu_custom_call.1} parent=1 // pred_check
      _
    $region23: #{tpu_custom_call.1} parent=1 // pred_check_branch
      %95 = sbr.rel (0) target = $region25
    $region24: #{tpu_custom_call.1} parent=1 // pred_region
      %97 = vsyncadd [#allocation4], 0
      %s98 = sshll.u32 [#allocation7], 4
      %s99 = int_to_ptr.vmem [resolvable:$true] %s98
      %s100 = sshll.u32 %s3, 4
      %s101 = int_to_ptr.hbm [resolvable:$true] %s100
      %106 = dma.vmem_to_hbm [thread:$0]  %s99, 256, %s101, [#allocation4], 128, 128, 8
    $region25: #{tpu_custom_call.1} parent=1 // pred_fallthru
      _
    // Predicated region
    $region26: #{tpu_custom_call.1} parent=1 // pred_check
      _
    $region27: #{tpu_custom_call.1} parent=1 // pred_check_branch
      %108 = sbr.rel (0) target = $region29
    $region28: #{tpu_custom_call.1} parent=1 // pred_region
      %110 = dma.done [#allocation4], 256
    $region29: #{tpu_custom_call.1} parent=1 // pred_fallthru
      _
    %111 = vsyncpa [#allocation3], 1
    %112 = vsyncpa [#allocation6], 1
    %113 = vsyncpa [#allocation4], 1

</llo_original>
